<compile_context>
chip_gen: v7x
topology: tpu7x:2x2x1
jax: 0.10.0
libtpu: 0.0.40
codegen_flags: <defaults>
</compile_context>

<pallas_src>
import functools

import jax
import jax.numpy as jnp
from jax.experimental import pallas as pl
from jax.experimental.pallas import tpu as pltpu


def _rel_pos_bias_kernel(emb_ref, out_ref, *, max_dist, tile_i, tile_j):
    """One grid step writes a (tile_i, tile_j) slab of bias[h].

    emb_ref : SMEM, (V, H) f32 embedding table (V = 2*max_dist + 1)
    out_ref : VMEM, (tile_i, tile_j) block of the (H, S, S) output (head squeezed)
    """
    V = 2 * max_dist + 1

    h = pl.program_id(0)                   # head index
    i0 = pl.program_id(1) * tile_i         # first query row of this block
    j0 = pl.program_id(2) * tile_j         # first key column of this block

    # Range of (j - i) covered by this block (conservative for clipped edge blocks).
    max_rel = (j0 + tile_j - 1) - i0
    min_rel = j0 - (i0 + tile_i - 1)

    below = max_rel <= -max_dist           # whole block clamps to idx 0
    above = jnp.logical_and(min_rel >= max_dist,
                            jnp.logical_not(below))   # whole block clamps to idx 2D
    band = jnp.logical_and(jnp.logical_not(below), jnp.logical_not(above))

    @pl.when(below)
    def _():
        out_ref[...] = jnp.full(out_ref.shape, emb_ref[0, h], out_ref.dtype)

    @pl.when(above)
    def _():
        out_ref[...] = jnp.full(out_ref.shape, emb_ref[2 * max_dist, h],
                                out_ref.dtype)

    @pl.when(band)
    def _():
        # 2-D iotas over the lane-dense block; rel = j - i directly (no div/mod).
        i = jax.lax.broadcasted_iota(jnp.int32, (tile_i, tile_j), 0) + i0
        j = jax.lax.broadcasted_iota(jnp.int32, (tile_i, tile_j), 1) + j0
        idx = jnp.clip(j - i, -max_dist, max_dist) + max_dist    # in [0, V)

        # V-way select chain on the VPU; only band-intersecting blocks pay it.
        acc = jnp.full((tile_i, tile_j), emb_ref[0, h], jnp.float32)
        for v in range(1, V):
            acc = jnp.where(idx == v, emb_ref[v, h], acc)
        out_ref[...] = acc.astype(out_ref.dtype)


def _pick_tiles(seq_len, tile_i=None, tile_j=None,
                max_tile_i=512, max_tile_j=1024):
    """Choose (tile_i, tile_j) satisfying TPU (8, 128) block-tiling rules.

    tile_i: multiple of 8 (or full S); tile_j: multiple of 128 (or full S).
    Edge blocks are handled with a cdiv grid, so tiles need not divide S.
    """
    S = seq_len
    if tile_i is None:
        tile_i = S if S <= max_tile_i else max_tile_i
    if tile_j is None:
        tile_j = S if S <= max_tile_j else max_tile_j
    assert tile_i == S or tile_i % 8 == 0, "tile_i must be a multiple of 8 or S"
    assert tile_j == S or tile_j % 128 == 0, "tile_j must be a multiple of 128 or S"
    return tile_i, tile_j


def relative_positional_encoding(emb_table, seq_len, max_dist,
                                 tile_i=None, tile_j=None):
    """emb_table: (2*max_dist+1, num_heads). Returns (num_heads, S, S)."""
    V, H = emb_table.shape
    assert V == 2 * max_dist + 1
    S = int(seq_len)
    out_dtype = emb_table.dtype
    table_f32 = emb_table.astype(jnp.float32)   # SMEM is 32-bit scalar memory

    tile_i, tile_j = _pick_tiles(S, tile_i, tile_j)
    grid = (H, pl.cdiv(S, tile_i), pl.cdiv(S, tile_j))

    kernel = functools.partial(_rel_pos_bias_kernel, max_dist=max_dist,
                               tile_i=tile_i, tile_j=tile_j)

    return pl.pallas_call(
        kernel,
        out_shape=jax.ShapeDtypeStruct((H, S, S), out_dtype),
        grid=grid,
        in_specs=[
            # Tiny table lives in SMEM for scalar reads; not re-tiled per step.
            pl.BlockSpec(memory_space=pltpu.MemorySpace.SMEM),
        ],
        out_specs=pl.BlockSpec((None, tile_i, tile_j),
                               lambda h, it, jt: (h, it, jt)),
        compiler_params=pltpu.CompilerParams(
            dimension_semantics=("parallel", "parallel", "parallel")),
    )(table_f32)


def _reference(emb_table, seq_len, max_dist):
    r = jnp.arange(seq_len)
    rel = r[None, :] - r[:, None]
    idx = jnp.clip(rel, -max_dist, max_dist) + max_dist
    bias = emb_table[idx]                      # (S, S, H)
    return jnp.transpose(bias, (2, 0, 1))      # (H, S, S)


if __name__ == "__main__":
    # --- main demo at module-implied small shapes -------------------------
    num_heads = 4
    max_relative_distance = 8
    seq_len = 8

    # deterministic trunc_normal(std=0.02) init of the embedding weight
    key = jax.random.PRNGKey(0)
    emb_table = 0.02 * jax.random.truncated_normal(
        key, -2.0, 2.0,
        (2 * max_relative_distance + 1, num_heads), jnp.float32)

    bias = relative_positional_encoding(emb_table, seq_len,
                                        max_relative_distance)
    bias = jax.block_until_ready(bias)

    ref = _reference(emb_table, seq_len, max_relative_distance)
    assert bias.shape == (num_heads, seq_len, seq_len)
    assert jnp.allclose(bias, ref, atol=1e-6), "mismatch vs reference (S=8)"

    # --- secondary check exercising the band-skip constant-fill blocks ----
    H2, D2, S2 = 2, 4, 256
    key2 = jax.random.PRNGKey(0)
    emb2 = 0.02 * jax.random.truncated_normal(
        key2, -2.0, 2.0, (2 * D2 + 1, H2), jnp.float32)
    bias2 = relative_positional_encoding(emb2, S2, D2, tile_i=64, tile_j=128)
    bias2 = jax.block_until_ready(bias2)
    ref2 = _reference(emb2, S2, D2)
    assert bias2.shape == (H2, S2, S2)
    assert jnp.allclose(bias2, ref2, atol=1e-6), "mismatch vs reference (S=256)"

    print("KERNEL_OK")
</pallas_src>

<mosaic_0001>
module attributes {stable_mosaic.version = 11 : i64} {
  func.func @_rel_pos_bias_kernel(%arg0: i32, %arg1: i32, %arg2: i32, %arg3: memref<17x4xf32, #tpu.memory_space<smem>>, %arg4: memref<1x8x8xf32, #tpu.memory_space<vmem>>) attributes {dimension_semantics = [#tpu.dimension_semantics<parallel>, #tpu.dimension_semantics<parallel>, #tpu.dimension_semantics<parallel>], iteration_bounds = array<i64: 4, 1, 1>, scalar_prefetch = 0 : i64, scratch_operands = 0 : i64, tpu.core_type = #tpu.core_type<tc>, window_params = [{transform_indices = @transform_0, window_bounds = array<i64: 17, 4>}, {transform_indices = @transform_1, window_bounds = array<i64: 1, 8, 8>}]} {
    %c8_i32 = arith.constant 8 : i32
    %0 = arith.muli %arg1, %c8_i32 : i32
    %c8_i32_0 = arith.constant 8 : i32
    %1 = arith.muli %arg2, %c8_i32_0 : i32
    %c8_i32_1 = arith.constant 8 : i32
    %2 = arith.addi %1, %c8_i32_1 : i32
    %c1_i32 = arith.constant 1 : i32
    %3 = arith.subi %2, %c1_i32 : i32
    %4 = arith.subi %3, %0 : i32
    %c8_i32_2 = arith.constant 8 : i32
    %5 = arith.addi %0, %c8_i32_2 : i32
    %c1_i32_3 = arith.constant 1 : i32
    %6 = arith.subi %5, %c1_i32_3 : i32
    %7 = arith.subi %1, %6 : i32
    %c-8_i32 = arith.constant -8 : i32
    %8 = arith.cmpi sle, %4, %c-8_i32 : i32
    %c8_i32_4 = arith.constant 8 : i32
    %9 = arith.cmpi sge, %7, %c8_i32_4 : i32
    %true = arith.constant true
    %10 = arith.xori %8, %true : i1
    %11 = arith.andi %9, %10 : i1
    %true_5 = arith.constant true
    %12 = arith.xori %8, %true_5 : i1
    %true_6 = arith.constant true
    %13 = arith.xori %11, %true_6 : i1
    %14 = arith.andi %12, %13 : i1
    %15 = arith.extui %8 : i1 to i32
    %c0_i32 = arith.constant 0 : i32
    %16 = arith.cmpi ne, %15, %c0_i32 : i32
    scf.if %16 {
      %c0 = arith.constant 0 : index
      %21 = arith.index_cast %arg0 : i32 to index
      %22 = memref.load %arg3[%c0, %21] : memref<17x4xf32, #tpu.memory_space<smem>>
      %23 = vector.broadcast %22 : f32 to vector<8x8xf32>
      %c0_9 = arith.constant 0 : index
      %c0_10 = arith.constant 0 : index
      %c0_11 = arith.constant 0 : index
      %24 = vector.load %arg4[%c0_9, %c0_10, %c0_11] : memref<1x8x8xf32, #tpu.memory_space<vmem>>, vector<1x8x8xf32>
      %25 = vector.shape_cast %24 : vector<1x8x8xf32> to vector<8x8xf32>
      %26 = vector.shape_cast %23 : vector<8x8xf32> to vector<1x8x8xf32>
      tpu.vector_store %arg4[%c0_9, %c0_10, %c0_11], %26 {strides = array<i32>} : memref<1x8x8xf32, #tpu.memory_space<vmem>>, vector<1x8x8xf32>,
    } else {
    }
    %17 = arith.extui %11 : i1 to i32
    %c0_i32_7 = arith.constant 0 : i32
    %18 = arith.cmpi ne, %17, %c0_i32_7 : i32
    scf.if %18 {
      %c16 = arith.constant 16 : index
      %21 = arith.index_cast %arg0 : i32 to index
      %22 = memref.load %arg3[%c16, %21] : memref<17x4xf32, #tpu.memory_space<smem>>
      %23 = vector.broadcast %22 : f32 to vector<8x8xf32>
      %c0 = arith.constant 0 : index
      %c0_9 = arith.constant 0 : index
      %c0_10 = arith.constant 0 : index
      %24 = vector.load %arg4[%c0, %c0_9, %c0_10] : memref<1x8x8xf32, #tpu.memory_space<vmem>>, vector<1x8x8xf32>
      %25 = vector.shape_cast %24 : vector<1x8x8xf32> to vector<8x8xf32>
      %26 = vector.shape_cast %23 : vector<8x8xf32> to vector<1x8x8xf32>
      tpu.vector_store %arg4[%c0, %c0_9, %c0_10], %26 {strides = array<i32>} : memref<1x8x8xf32, #tpu.memory_space<vmem>>, vector<1x8x8xf32>,
    } else {
    }
    %19 = arith.extui %14 : i1 to i32
    %c0_i32_8 = arith.constant 0 : i32
    %20 = arith.cmpi ne, %19, %c0_i32_8 : i32
    scf.if %20 {
      %21 = tpu.iota {dimensions = array<i32: 0>} : vector<8x8xi32>
      %22 = vector.broadcast %0 : i32 to vector<8x8xi32>
      %23 = arith.addi %21, %22 : vector<8x8xi32>
      %24 = tpu.iota {dimensions = array<i32: 1>} : vector<8x8xi32>
      %25 = vector.broadcast %1 : i32 to vector<8x8xi32>
      %26 = arith.addi %24, %25 : vector<8x8xi32>
      %27 = arith.subi %26, %23 : vector<8x8xi32>
      %c-8_i32_9 = arith.constant -8 : i32
      %c8_i32_10 = arith.constant 8 : i32
      %28 = vector.broadcast %c-8_i32_9 : i32 to vector<8x8xi32>
      %29 = arith.maxsi %28, %27 : vector<8x8xi32>
      %30 = vector.broadcast %c8_i32_10 : i32 to vector<8x8xi32>
      %31 = arith.minsi %30, %29 : vector<8x8xi32>
      %c8_i32_11 = arith.constant 8 : i32
      %32 = vector.broadcast %c8_i32_11 : i32 to vector<8x8xi32>
      %33 = arith.addi %31, %32 : vector<8x8xi32>
      %c0 = arith.constant 0 : index
      %34 = arith.index_cast %arg0 : i32 to index
      %35 = memref.load %arg3[%c0, %34] : memref<17x4xf32, #tpu.memory_space<smem>>
      %36 = vector.broadcast %35 : f32 to vector<8x8xf32>
      %c1_i32_12 = arith.constant 1 : i32
      %37 = vector.broadcast %c1_i32_12 : i32 to vector<8x8xi32>
      %38 = arith.cmpi eq, %33, %37 : vector<8x8xi32>
      %c1 = arith.constant 1 : index
      %39 = arith.index_cast %arg0 : i32 to index
      %40 = memref.load %arg3[%c1, %39] : memref<17x4xf32, #tpu.memory_space<smem>>
      %41 = vector.broadcast %40 : f32 to vector<8x8xf32>
      %42 = arith.select %38, %41, %36 : vector<8x8xi1>, vector<8x8xf32>
      %c2_i32 = arith.constant 2 : i32
      %43 = vector.broadcast %c2_i32 : i32 to vector<8x8xi32>
      %44 = arith.cmpi eq, %33, %43 : vector<8x8xi32>
      %c2 = arith.constant 2 : index
      %45 = arith.index_cast %arg0 : i32 to index
      %46 = memref.load %arg3[%c2, %45] : memref<17x4xf32, #tpu.memory_space<smem>>
      %47 = vector.broadcast %46 : f32 to vector<8x8xf32>
      %48 = arith.select %44, %47, %42 : vector<8x8xi1>, vector<8x8xf32>
      %c3_i32 = arith.constant 3 : i32
      %49 = vector.broadcast %c3_i32 : i32 to vector<8x8xi32>
      %50 = arith.cmpi eq, %33, %49 : vector<8x8xi32>
      %c3 = arith.constant 3 : index
      %51 = arith.index_cast %arg0 : i32 to index
      %52 = memref.load %arg3[%c3, %51] : memref<17x4xf32, #tpu.memory_space<smem>>
      %53 = vector.broadcast %52 : f32 to vector<8x8xf32>
      %54 = arith.select %50, %53, %48 : vector<8x8xi1>, vector<8x8xf32>
      %c4_i32 = arith.constant 4 : i32
      %55 = vector.broadcast %c4_i32 : i32 to vector<8x8xi32>
      %56 = arith.cmpi eq, %33, %55 : vector<8x8xi32>
      %c4 = arith.constant 4 : index
      %57 = arith.index_cast %arg0 : i32 to index
      %58 = memref.load %arg3[%c4, %57] : memref<17x4xf32, #tpu.memory_space<smem>>
      %59 = vector.broadcast %58 : f32 to vector<8x8xf32>
      %60 = arith.select %56, %59, %54 : vector<8x8xi1>, vector<8x8xf32>
      %c5_i32 = arith.constant 5 : i32
      %61 = vector.broadcast %c5_i32 : i32 to vector<8x8xi32>
      %62 = arith.cmpi eq, %33, %61 : vector<8x8xi32>
      %c5 = arith.constant 5 : index
      %63 = arith.index_cast %arg0 : i32 to index
      %64 = memref.load %arg3[%c5, %63] : memref<17x4xf32, #tpu.memory_space<smem>>
      %65 = vector.broadcast %64 : f32 to vector<8x8xf32>
      %66 = arith.select %62, %65, %60 : vector<8x8xi1>, vector<8x8xf32>
      %c6_i32 = arith.constant 6 : i32
      %67 = vector.broadcast %c6_i32 : i32 to vector<8x8xi32>
      %68 = arith.cmpi eq, %33, %67 : vector<8x8xi32>
      %c6 = arith.constant 6 : index
      %69 = arith.index_cast %arg0 : i32 to index
      %70 = memref.load %arg3[%c6, %69] : memref<17x4xf32, #tpu.memory_space<smem>>
      %71 = vector.broadcast %70 : f32 to vector<8x8xf32>
      %72 = arith.select %68, %71, %66 : vector<8x8xi1>, vector<8x8xf32>
      %c7_i32 = arith.constant 7 : i32
      %73 = vector.broadcast %c7_i32 : i32 to vector<8x8xi32>
      %74 = arith.cmpi eq, %33, %73 : vector<8x8xi32>
      %c7 = arith.constant 7 : index
      %75 = arith.index_cast %arg0 : i32 to index
      %76 = memref.load %arg3[%c7, %75] : memref<17x4xf32, #tpu.memory_space<smem>>
      %77 = vector.broadcast %76 : f32 to vector<8x8xf32>
      %78 = arith.select %74, %77, %72 : vector<8x8xi1>, vector<8x8xf32>
      %c8_i32_13 = arith.constant 8 : i32
      %79 = vector.broadcast %c8_i32_13 : i32 to vector<8x8xi32>
      %80 = arith.cmpi eq, %33, %79 : vector<8x8xi32>
      %c8 = arith.constant 8 : index
      %81 = arith.index_cast %arg0 : i32 to index
      %82 = memref.load %arg3[%c8, %81] : memref<17x4xf32, #tpu.memory_space<smem>>
      %83 = vector.broadcast %82 : f32 to vector<8x8xf32>
      %84 = arith.select %80, %83, %78 : vector<8x8xi1>, vector<8x8xf32>
      %c9_i32 = arith.constant 9 : i32
      %85 = vector.broadcast %c9_i32 : i32 to vector<8x8xi32>
      %86 = arith.cmpi eq, %33, %85 : vector<8x8xi32>
      %c9 = arith.constant 9 : index
      %87 = arith.index_cast %arg0 : i32 to index
      %88 = memref.load %arg3[%c9, %87] : memref<17x4xf32, #tpu.memory_space<smem>>
      %89 = vector.broadcast %88 : f32 to vector<8x8xf32>
      %90 = arith.select %86, %89, %84 : vector<8x8xi1>, vector<8x8xf32>
      %c10_i32 = arith.constant 10 : i32
      %91 = vector.broadcast %c10_i32 : i32 to vector<8x8xi32>
      %92 = arith.cmpi eq, %33, %91 : vector<8x8xi32>
      %c10 = arith.constant 10 : index
      %93 = arith.index_cast %arg0 : i32 to index
      %94 = memref.load %arg3[%c10, %93] : memref<17x4xf32, #tpu.memory_space<smem>>
      %95 = vector.broadcast %94 : f32 to vector<8x8xf32>
      %96 = arith.select %92, %95, %90 : vector<8x8xi1>, vector<8x8xf32>
      %c11_i32 = arith.constant 11 : i32
      %97 = vector.broadcast %c11_i32 : i32 to vector<8x8xi32>
      %98 = arith.cmpi eq, %33, %97 : vector<8x8xi32>
      %c11 = arith.constant 11 : index
      %99 = arith.index_cast %arg0 : i32 to index
      %100 = memref.load %arg3[%c11, %99] : memref<17x4xf32, #tpu.memory_space<smem>>
      %101 = vector.broadcast %100 : f32 to vector<8x8xf32>
      %102 = arith.select %98, %101, %96 : vector<8x8xi1>, vector<8x8xf32>
      %c12_i32 = arith.constant 12 : i32
      %103 = vector.broadcast %c12_i32 : i32 to vector<8x8xi32>
      %104 = arith.cmpi eq, %33, %103 : vector<8x8xi32>
      %c12 = arith.constant 12 : index
      %105 = arith.index_cast %arg0 : i32 to index
      %106 = memref.load %arg3[%c12, %105] : memref<17x4xf32, #tpu.memory_space<smem>>
      %107 = vector.broadcast %106 : f32 to vector<8x8xf32>
      %108 = arith.select %104, %107, %102 : vector<8x8xi1>, vector<8x8xf32>
      %c13_i32 = arith.constant 13 : i32
      %109 = vector.broadcast %c13_i32 : i32 to vector<8x8xi32>
      %110 = arith.cmpi eq, %33, %109 : vector<8x8xi32>
      %c13 = arith.constant 13 : index
      %111 = arith.index_cast %arg0 : i32 to index
      %112 = memref.load %arg3[%c13, %111] : memref<17x4xf32, #tpu.memory_space<smem>>
      %113 = vector.broadcast %112 : f32 to vector<8x8xf32>
      %114 = arith.select %110, %113, %108 : vector<8x8xi1>, vector<8x8xf32>
      %c14_i32 = arith.constant 14 : i32
      %115 = vector.broadcast %c14_i32 : i32 to vector<8x8xi32>
      %116 = arith.cmpi eq, %33, %115 : vector<8x8xi32>
      %c14 = arith.constant 14 : index
      %117 = arith.index_cast %arg0 : i32 to index
      %118 = memref.load %arg3[%c14, %117] : memref<17x4xf32, #tpu.memory_space<smem>>
      %119 = vector.broadcast %118 : f32 to vector<8x8xf32>
      %120 = arith.select %116, %119, %114 : vector<8x8xi1>, vector<8x8xf32>
      %c15_i32 = arith.constant 15 : i32
      %121 = vector.broadcast %c15_i32 : i32 to vector<8x8xi32>
      %122 = arith.cmpi eq, %33, %121 : vector<8x8xi32>
      %c15 = arith.constant 15 : index
      %123 = arith.index_cast %arg0 : i32 to index
      %124 = memref.load %arg3[%c15, %123] : memref<17x4xf32, #tpu.memory_space<smem>>
      %125 = vector.broadcast %124 : f32 to vector<8x8xf32>
      %126 = arith.select %122, %125, %120 : vector<8x8xi1>, vector<8x8xf32>
      %c16_i32 = arith.constant 16 : i32
      %127 = vector.broadcast %c16_i32 : i32 to vector<8x8xi32>
      %128 = arith.cmpi eq, %33, %127 : vector<8x8xi32>
      %c16 = arith.constant 16 : index
      %129 = arith.index_cast %arg0 : i32 to index
      %130 = memref.load %arg3[%c16, %129] : memref<17x4xf32, #tpu.memory_space<smem>>
      %131 = vector.broadcast %130 : f32 to vector<8x8xf32>
      %132 = arith.select %128, %131, %126 : vector<8x8xi1>, vector<8x8xf32>
      %c0_14 = arith.constant 0 : index
      %c0_15 = arith.constant 0 : index
      %c0_16 = arith.constant 0 : index
      %133 = vector.load %arg4[%c0_14, %c0_15, %c0_16] : memref<1x8x8xf32, #tpu.memory_space<vmem>>, vector<1x8x8xf32>
      %134 = vector.shape_cast %133 : vector<1x8x8xf32> to vector<8x8xf32>
      %135 = vector.shape_cast %132 : vector<8x8xf32> to vector<1x8x8xf32>
      tpu.vector_store %arg4[%c0_14, %c0_15, %c0_16], %135 {strides = array<i32>} : memref<1x8x8xf32, #tpu.memory_space<vmem>>, vector<1x8x8xf32>,
    } else {
    }
    return
  }
  func.func @transform_0(%arg0: i32, %arg1: i32, %arg2: i32) -> (i32, i32) {
    %c0_i32 = arith.constant 0 : i32
    %c0_i32_0 = arith.constant 0 : i32
    %c0_i32_1 = arith.constant 0 : i32
    return %c0_i32, %c0_i32_0 : i32, i32
  }
  func.func @transform_1(%arg0: i32, %arg1: i32, %arg2: i32) -> (i32, i32, i32) {
    %c0_i32 = arith.constant 0 : i32
    return %arg0, %arg1, %arg2 : i32, i32, i32
  }
}

</mosaic_0001>

<llo_original>
// kernel: tpu_custom_call.1
$region0: #{tpu_custom_call.1}
  #allocation0 [shape = 'u32[]', space=smem, size = 0x4, offset = 0x4, fixed_abs, tag = 'smem constant byte address 0x4 - core index']
  #allocation1 [shape = 'u32[144,128]{1,0:T(1,128)}', space=vmem, size = 0x12000, scoped, tag = 'internal scratch']
  %s0 = inlined_call_operand.vmem [shape: f32[17,4], index: 0, kind: input, shape index: {}]
  %s1 = inlined_call_operand.hbm [shape: f32[4,8,8], index: 1, kind: output, shape index: {}]
  %s2 = sld [smem:[#allocation0]]
  $region53: #{tpu_custom_call.1} parent=0
    _
  %s4 = ssub.s32 1, %s2
  %s5 = scalar_select 0, %s4, %s2
  $region1: #{tpu_custom_call.1} parent=0
    #allocation2 [shape = 'u8[12288]{0}', space=smem, size = 0x3000, scoped, tag = 'input window, operand 0, single buffered']
    #allocation3 [shape = 's32[2]{0}', space=sflag, size = 0x8, scoped, tag = 'scoped memory for tpu_custom_call.1']
    #allocation4 [shape = 's32[2]{0}', space=sflag, size = 0x8, scoped, tag = 'scoped memory for tpu_custom_call.1']
    #allocation5 [shape = 'u8[8192]{0}', space=vmem, size = 0x2000, scoped, tag = 'output window, operand 0']
    %6 = vsyncpa [#allocation4], 0
    %7 = vsyncpa [#allocation3], 0
    %s8 = scalar_lea.sflag [#allocation3], 1
    %9 = vsyncpa %s8, 0
    loop: start=0, step=1, limit=6
    $region2: #{tpu_custom_call.1} parent=1 // loop_pre_header
      _
    $region3: #{tpu_custom_call.1} parent=1 // loop_header
      %s11 = sphi 0, %s15
      %p12 = scmp.ge.s32.totalorder %s11, 6
      %s18 = sphi 0, %s37
      %s19 = sphi 0, %s33
      %s20 = sphi 0, %s29
      %s21 = sphi 0, %s18
      %s22 = sphi 0, %s19
      %s23 = sphi 0, %s20
      %s24 = sphi 0, %s21
      %s25 = sphi 0, %s22
      %s26 = sphi 0, %s23
      %s38 = sphi 0, %s38
      %s40 = sphi 0, %s38
      %s41 = sphi 0, %s40
      %s55 = sphi 0, %s41
      %s65 = sphi 0, %s67
      %s68 = sphi 0, %s65
      %s69 = sphi 0, %s68
      %s85 = sphi 0, %s69
    $region4: #{tpu_custom_call.1} parent=1 // loop_header_branch
      %14 = sbr.rel (%p12) target = $region8
    $region5: #{tpu_custom_call.1} parent=1 // loop_body
      %s16 = ssub.s32 %s11, 1
      %s17 = ssub.s32 %s11, 2
      %s27 = sadd.s32 1, %s20
      %p28 = scmp.ge.s32.totalorder %s27, 1
      %s29 = scalar_select %p28, 0, %s27
      %s30 = sadd.s32 1, %s19
      %s31 = scalar_select %p28, %s30, %s19
      %p32 = scmp.ge.s32.totalorder %s31, 1
      %s33 = scalar_select %p32, 0, %s31
      %s34 = sadd.s32 1, %s18
      %s35 = scalar_select %p32, %s34, %s18
      %p36 = scmp.ge.s32.totalorder %s35, 4
      %s37 = scalar_select %p36, 0, %s35
      %s39 = sadd.s32 %s38, 1
      %p42 = scmp.eq.s32.totalorder %s11, 3
      %p43 = scmp.ne.s32.totalorder %s38, %s40
      %p44 = scmp.eq.s32.totalorder %s11, 0
      %p45 = por %p43, %p44
      %p46 = scmp.ne.s32.totalorder %s38, %s40
      %p47 = scmp.eq.s32.totalorder %s16, 3
      %p48 = por %p46, %p47
      %p49 = scmp.ne.s32.totalorder %s40, %s41
      %p50 = scmp.eq.s32.totalorder %s16, 0
      %p51 = por %p49, %p50
      %p52 = scmp.ne.s32.totalorder %s40, %s41
      %p53 = scmp.eq.s32.totalorder %s17, 3
      %p54 = por %p52, %p53
      %p56 = scmp.ne.s32.totalorder %s41, %s55
      %p57 = scmp.eq.s32.totalorder %s17, 0
      %p58 = por %p56, %p57
      %s59 = ssub.s32 %s18, %s37
      %s60 = ssub.s32 %s19, %s33
      %s61 = sor.u32 %s59, %s60
      %s62 = ssub.s32 %s20, %s29
      %s63 = sor.u32 %s61, %s62
      %p64 = scmp.eq.s32.totalorder %s63, 0
      %s66 = sadd.s32 %s65, 1
      %s67 = scalar_select %p64, %s65, %s66
      %p70 = pneg %p64
      %p71 = scmp.eq.s32.totalorder %s11, 3
      %p72 = por %p70, %p71
      %p73 = scmp.ne.s32.totalorder %s65, %s68
      %p74 = scmp.eq.s32.totalorder %s11, 0
      %p75 = por %p73, %p74
      %p76 = scmp.ne.s32.totalorder %s65, %s68
      %p77 = scmp.eq.s32.totalorder %s16, 3
      %p78 = por %p76, %p77
      %p79 = scmp.ne.s32.totalorder %s68, %s69
      %p80 = scmp.eq.s32.totalorder %s16, 0
      %p81 = por %p79, %p80
      %p82 = scmp.ne.s32.totalorder %s68, %s69
      %p83 = scmp.eq.s32.totalorder %s17, 3
      %p84 = por %p82, %p83
      %p86 = scmp.ne.s32.totalorder %s69, %s85
      %p87 = scmp.eq.s32.totalorder %s17, 0
      %p88 = por %p86, %p87
      %p89 = scmp.le.s32.totalorder 1, %s11
      %p90 = scmp.lt.s32.totalorder %s11, 5
      %p91 = pnand %p89, %p90
      %p92 = pneg %p91
      // Predicated region
      $region9: #{tpu_custom_call.1} parent=5 // pred_check
        _
      $region10: #{tpu_custom_call.1} parent=5 // pred_check_branch
        %94 = sbr.rel (%p91) target = $region12
      $region11: #{tpu_custom_call.1} parent=5 // pred_region
        %s95 = ssub.s32 %s11, 1
        // Predicated region
        $region13: #{tpu_custom_call.1} parent=11 // pred_check
          %p96 = pneg %p51
        $region14: #{tpu_custom_call.1} parent=11 // pred_check_branch
          %98 = sbr.rel (%p96) target = $region16
        $region15: #{tpu_custom_call.1} parent=11 // pred_region
          %s100 = ssub.s32 384, 384
          %101 = vsyncadd [#allocation4], %s100
          %s102 = sshll.u32 %s0, 4
          %s103 = int_to_ptr.vmem [resolvable:$true] %s102
          %108 = dma.vmem_to_smem %s103, 384, [#allocation2], [#allocation4], 128, 128, 8
        $region16: #{tpu_custom_call.1} parent=11 // pred_fallthru
          _
      $region12: #{tpu_custom_call.1} parent=5 // pred_fallthru
        _
      %p109 = scmp.lt.s32.totalorder %s11, 4
      // Predicated region
      $region17: #{tpu_custom_call.1} parent=5 // pred_check
        %p110 = pneg %p109
      $region18: #{tpu_custom_call.1} parent=5 // pred_check_branch
        %112 = sbr.rel (%p110) target = $region20
      $region19: #{tpu_custom_call.1} parent=5 // pred_region
        _
      $region20: #{tpu_custom_call.1} parent=5 // pred_fallthru
        _
      %p113 = scmp.le.s32.totalorder 1, %s11
      %p114 = scmp.lt.s32.totalorder %s11, 5
      %p115 = pnand %p113, %p114
      %p116 = pneg %p115
      // Predicated region
      $region21: #{tpu_custom_call.1} parent=5 // pred_check
        _
      $region22: #{tpu_custom_call.1} parent=5 // pred_check_branch
        %118 = sbr.rel (%p115) target = $region24
      $region23: #{tpu_custom_call.1} parent=5 // pred_region
        %s119 = ssub.s32 %s11, 1
        // Predicated region
        $region25: #{tpu_custom_call.1} parent=23 // pred_check
          %p120 = pneg %p51
        $region26: #{tpu_custom_call.1} parent=23 // pred_check_branch
          %122 = sbr.rel (%p120) target = $region28
        $region27: #{tpu_custom_call.1} parent=23 // pred_region
          %123 = dma.done [#allocation4], 384
        $region28: #{tpu_custom_call.1} parent=23 // pred_fallthru
          _
        %124 = sfence
        %p125 = pneg %p51
        %p126 = pneg %p48
        %p127 = pneg %p81
        %p128 = pneg %p78
        %s129 = sand.u32 %s68, 1
        %s130 = scalar_lea.sflag [#allocation3], %s129
        %s131 = sand.u32 %s68, 1
        %s132 = smul.addr %s131, 8
        %s133 = scalar_lea.vmem [#allocation5], %s132
        %s134 = smul.u32 %s22, 8
        %s135 = smul.u32 %s23, 8
        %s136 = sadd.s32 %s135, 7
        %s137 = ssub.s32 %s136, %s134
        %s138 = sadd.s32 %s134, 7
        %s139 = ssub.s32 %s135, %s138
        %p140 = scmp.le.s32.totalorder %s137, 4294967288
        %p141 = scmp.ge.s32.totalorder %s139, 8
        %p142 = scmp.gt.s32.totalorder %s137, 4294967288
        %p143 = pnand %p141, %p142
        %p144 = pneg %p143
        %p145 = pneg %p144
        %p146 = pnand %p142, %p145
        %p147 = pneg %p146
        // Predicated region
        $region29: #{tpu_custom_call.1} parent=23 // pred_check
          %p148 = pneg %p140
        $region30: #{tpu_custom_call.1} parent=23 // pred_check_branch
          %150 = sbr.rel (%p148) target = $region32
        $region31: #{tpu_custom_call.1} parent=23 // pred_region
          %s151 = sld [smem:[#allocation2 + %s21]]
          %v152 = vstv %s151
          %vm153 = vcmask 64512
          %154 = vst.msk [vmem:[%s133] sm:$0xff] %vm153, %v152
        $region32: #{tpu_custom_call.1} parent=23 // pred_fallthru
          _
        // Predicated region
        $region33: #{tpu_custom_call.1} parent=23 // pred_check
          _
        $region34: #{tpu_custom_call.1} parent=23 // pred_check_branch
          %156 = sbr.rel (%p143) target = $region36
        $region35: #{tpu_custom_call.1} parent=23 // pred_region
          %s157 = sshra.s32 %s21, 7
          %s158 = sand.u32 %s21, 127
          %s159 = sadd.s32 %s157, 16
          %s160 = smul.u32 %s159, 128
          %s161 = sshra.s32 %s21, 7
          %s162 = sand.u32 %s21, 127
          %s163 = sadd.s32 %s160, %s162
          %s164 = sld [smem:[#allocation2 + %s163]]
          %v165 = vstv %s164
          %vm166 = vcmask 64512
          %167 = vst.msk [vmem:[%s133] sm:$0xff] %vm166, %v165
        $region36: #{tpu_custom_call.1} parent=23 // pred_fallthru
          _
        // Predicated region
        $region37: #{tpu_custom_call.1} parent=23 // pred_check
          _
        $region38: #{tpu_custom_call.1} parent=23 // pred_check_branch
          %169 = sbr.rel (%p146) target = $region40
        $region39: #{tpu_custom_call.1} parent=23 // pred_region
          %v170 = vlaneseq
          %v171 = vshrl.u32 %v170, 7
          %v172 = vstv %s134
          %v173 = vadd.s32 %v171, %v172
          %v174 = vlaneseq
          %v175 = vand.u32 %v174, 127
          %v176 = vstv %s135
          %v177 = vadd.s32 %v175, %v176
          %v178 = vsub.s32 %v177, %v173
          %vm179 = vcmp.gt.s32.totalorder %v178, 4294967288
          %v180 = vsel %vm179, %v178, 4294967288
          %vm181 = vcmp.lt.s32.totalorder %v180, 8
          %v182 = vsel %vm181, %v180, 8
          %v183 = vadd.s32 %v182, 8
          %s184 = sld [smem:[#allocation2 + %s21]]
          %v185 = vstv %s184
          %vm186 = vcmp.eq.s32.totalorder %v183, 1
          %s187 = sshra.s32 %s21, 7
          %s188 = sand.u32 %s21, 127
          %s189 = sadd.s32 %s187, 1
          %s190 = smul.u32 %s189, 128
          %s191 = sshra.s32 %s21, 7
          %s192 = sand.u32 %s21, 127
          %s193 = sadd.s32 %s190, %s192
          %s194 = sld [smem:[#allocation2 + %s193]]
          %v195 = vstv %s194
          %v196 = vsel %vm186, %v195, %v185
          %vm197 = vcmp.eq.s32.totalorder %v183, 2
          %s198 = sadd.s32 %s187, 2
          %s199 = smul.u32 %s198, 128
          %s200 = sadd.s32 %s199, %s192
          %s201 = sld [smem:[#allocation2 + %s200]]
          %v202 = vstv %s201
          %v203 = vsel %vm197, %v202, %v196
          %vm204 = vcmp.eq.s32.totalorder %v183, 3
          %s205 = sadd.s32 %s187, 3
          %s206 = smul.u32 %s205, 128
          %s207 = sadd.s32 %s206, %s192
          %s208 = sld [smem:[#allocation2 + %s207]]
          %v209 = vstv %s208
          %v210 = vsel %vm204, %v209, %v203
          %vm211 = vcmp.eq.s32.totalorder %v183, 4
          %s212 = sadd.s32 %s187, 4
          %s213 = smul.u32 %s212, 128
          %s214 = sadd.s32 %s213, %s192
          %s215 = sld [smem:[#allocation2 + %s214]]
          %v216 = vstv %s215
          %v217 = vsel %vm211, %v216, %v210
          %vm218 = vcmp.eq.s32.totalorder %v183, 5
          %s219 = sadd.s32 %s187, 5
          %s220 = smul.u32 %s219, 128
          %s221 = sadd.s32 %s220, %s192
          %s222 = sld [smem:[#allocation2 + %s221]]
          %v223 = vstv %s222
          %v224 = vsel %vm218, %v223, %v217
          %vm225 = vcmp.eq.s32.totalorder %v183, 6
          %s226 = sadd.s32 %s187, 6
          %s227 = smul.u32 %s226, 128
          %s228 = sadd.s32 %s227, %s192
          %s229 = sld [smem:[#allocation2 + %s228]]
          %v230 = vstv %s229
          %v231 = vsel %vm225, %v230, %v224
          %vm232 = vcmp.eq.s32.totalorder %v183, 7
          %s233 = sadd.s32 %s187, 7
          %s234 = smul.u32 %s233, 128
          %s235 = sadd.s32 %s234, %s192
          %s236 = sld [smem:[#allocation2 + %s235]]
          %v237 = vstv %s236
          %v238 = vsel %vm232, %v237, %v231
          %vm239 = vcmp.eq.s32.totalorder %v183, 8
          %s240 = sadd.s32 %s187, 8
          %s241 = smul.u32 %s240, 128
          %s242 = sadd.s32 %s241, %s192
          %s243 = sld [smem:[#allocation2 + %s242]]
          %v244 = vstv %s243
          %v245 = vsel %vm239, %v244, %v238
          %vm246 = vcmp.eq.s32.totalorder %v183, 9
          %s247 = sadd.s32 %s187, 9
          %s248 = smul.u32 %s247, 128
          %s249 = sadd.s32 %s248, %s192
          %s250 = sld [smem:[#allocation2 + %s249]]
          %v251 = vstv %s250
          %v252 = vsel %vm246, %v251, %v245
          %vm253 = vcmp.eq.s32.totalorder %v183, 10
          %s254 = sadd.s32 %s187, 10
          %s255 = smul.u32 %s254, 128
          %s256 = sadd.s32 %s255, %s192
          %s257 = sld [smem:[#allocation2 + %s256]]
          %v258 = vstv %s257
          %v259 = vsel %vm253, %v258, %v252
          %vm260 = vcmp.eq.s32.totalorder %v183, 11
          %s261 = sadd.s32 %s187, 11
          %s262 = smul.u32 %s261, 128
          %s263 = sadd.s32 %s262, %s192
          %s264 = sld [smem:[#allocation2 + %s263]]
          %v265 = vstv %s264
          %v266 = vsel %vm260, %v265, %v259
          %vm267 = vcmp.eq.s32.totalorder %v183, 12
          %s268 = sadd.s32 %s187, 12
          %s269 = smul.u32 %s268, 128
          %s270 = sadd.s32 %s269, %s192
          %s271 = sld [smem:[#allocation2 + %s270]]
          %v272 = vstv %s271
          %v273 = vsel %vm267, %v272, %v266
          %vm274 = vcmp.eq.s32.totalorder %v183, 13
          %s275 = sadd.s32 %s187, 13
          %s276 = smul.u32 %s275, 128
          %s277 = sadd.s32 %s276, %s192
          %s278 = sld [smem:[#allocation2 + %s277]]
          %v279 = vstv %s278
          %v280 = vsel %vm274, %v279, %v273
          %vm281 = vcmp.eq.s32.totalorder %v183, 14
          %s282 = sadd.s32 %s187, 14
          %s283 = smul.u32 %s282, 128
          %s284 = sadd.s32 %s283, %s192
          %s285 = sld [smem:[#allocation2 + %s284]]
          %v286 = vstv %s285
          %v287 = vsel %vm281, %v286, %v280
          %vm288 = vcmp.eq.s32.totalorder %v183, 15
          %s289 = sadd.s32 %s187, 15
          %s290 = smul.u32 %s289, 128
          %s291 = sadd.s32 %s290, %s192
          %s292 = sld [smem:[#allocation2 + %s291]]
          %v293 = vstv %s292
          %v294 = vsel %vm288, %v293, %v287
          %vm295 = vcmp.eq.s32.totalorder %v183, 16
          %s296 = sadd.s32 %s187, 16
          %s297 = smul.u32 %s296, 128
          %s298 = sadd.s32 %s297, %s192
          %s299 = sld [smem:[#allocation2 + %s298]]
          %v300 = vstv %s299
          %v301 = vsel %vm295, %v300, %v294
          %vm302 = vcmask 64512
          %303 = vst.msk [vmem:[%s133] sm:$0xff] %vm302, %v301
        $region40: #{tpu_custom_call.1} parent=23 // pred_fallthru
          _
        %s304 = sand.u32 %s68, 1
        %s305 = scalar_lea.sflag [#allocation3], %s304
        %s306 = sand.u32 %s68, 1
        %s307 = smul.addr %s306, 8
        %s308 = scalar_lea.vmem [#allocation5], %s307
        // Predicated region
        $region41: #{tpu_custom_call.1} parent=23 // pred_check
          %p309 = pneg %p78
        $region42: #{tpu_custom_call.1} parent=23 // pred_check_branch
          %311 = sbr.rel (%p309) target = $region44
        $region43: #{tpu_custom_call.1} parent=23 // pred_region
          %s313 = ssub.s32 128, 128
          %314 = vsyncadd %s305, %s313
          %s315 = sadd.s32 %s23, %s22
          %s316 = sadd.s32 %s315, %s21
          %s317 = smul.addr %s316, 128
          %s318 = scalar_lea.hbm %s1, %s317
          %s320 = sshll.u32 %s308, 4
          %s321 = int_to_ptr.vmem [resolvable:$true] %s320
          %323 = dma.vmem_to_hbm [thread:$0]  %s321, 128, %s318, %s305
        $region44: #{tpu_custom_call.1} parent=23 // pred_fallthru
          _
      $region24: #{tpu_custom_call.1} parent=5 // pred_fallthru
        _
      %p324 = scmp.le.s32.totalorder 2, %s11
      // Predicated region
      $region45: #{tpu_custom_call.1} parent=5 // pred_check
        %p325 = pneg %p324
      $region46: #{tpu_custom_call.1} parent=5 // pred_check_branch
        %327 = sbr.rel (%p325) target = $region48
      $region47: #{tpu_custom_call.1} parent=5 // pred_region
        %s328 = ssub.s32 %s11, 2
        // Predicated region
        $region49: #{tpu_custom_call.1} parent=47 // pred_check
          %p329 = pneg %p84
        $region50: #{tpu_custom_call.1} parent=47 // pred_check_branch
          %331 = sbr.rel (%p329) target = $region52
        $region51: #{tpu_custom_call.1} parent=47 // pred_region
          %s332 = sand.u32 %s69, 1
          %s333 = scalar_lea.sflag [#allocation3], %s332
          %s334 = sand.u32 %s69, 1
          %s335 = smul.addr %s334, 8
          %s336 = scalar_lea.vmem [#allocation5], %s335
          %337 = dma.done %s333, 128
        $region52: #{tpu_custom_call.1} parent=47 // pred_fallthru
          _
      $region48: #{tpu_custom_call.1} parent=5 // pred_fallthru
        _
    $region6: #{tpu_custom_call.1} parent=1 // loop_footer
      %s15 = sadd.s32 1, %s11
    $region7: #{tpu_custom_call.1} parent=1 // loop_footer_branch
      %10 = sbr.rel target = $region3
    $region8: #{tpu_custom_call.1} parent=1 // loop_exit
      _
    %338 = vsyncpa [#allocation3], 1
    %s339 = scalar_lea.sflag [#allocation3], 1
    %340 = vsyncpa %s339, 1
    %341 = vsyncpa [#allocation4], 1
    %s342 = scalar_lea.sflag [#allocation4], 1
    %343 = vsyncpa %s342, 1

</llo_original>
